<compile_context>
chip_gen: v7x
topology: tpu7x:2x2x1
jax: 0.10.0
libtpu: 0.0.40
codegen_flags: <defaults>
</compile_context>

<pallas_src>
import functools
import math

import jax
import jax.numpy as jnp
from jax.experimental import pallas as pl
from jax.experimental.pallas import tpu as pltpu


def _nerf_small_kernel(xT_ref, w0T_ref, w1T_ref, w2T_ref, o_ref):
    # xT: (Kp, T)   w0T: (H, Kp)   w1T: (H, H)   w2T: (1, H)   o: (1, T)
    x = xT_ref[...]                                   # (Kp, T) compute dtype

    # Layer 0 (MXU): zero-padded K, so the padded rows/cols contribute 0.
    h = jnp.dot(w0T_ref[...], x, preferred_element_type=jnp.float32)
    h = jnp.maximum(h, 0.0)                           # (H, T) f32

    # Layer 1 (MXU): (H, H) @ (H, T); T sits on the MXU N / lane axis.
    w1 = w1T_ref[...]
    h = jnp.dot(w1, h.astype(w1.dtype), preferred_element_type=jnp.float32)
    h = jnp.maximum(h, 0.0)                           # (H, T) f32

    # Layer 2 (MXU, M=1): result pops out lane-dense as the (1, T) out block.
    w2 = w2T_ref[...]
    s = jnp.dot(w2, h.astype(w2.dtype), preferred_element_type=jnp.float32)
    o_ref[...] = jnp.maximum(s, 0.0).astype(o_ref.dtype)


def nerf_small_forward(x, w0, w1, w2, *, input_ch=3, tile_n=16384,
                       compute_dtype=jnp.bfloat16):
    """x: [..., C>=input_ch] -> sigma: [..., 1]  (float32).

    w0: (input_ch, hidden), w1: (hidden, hidden), w2: (hidden, 1)
    (i.e. torch Linear weights transposed so that h @ W is the layer).
    """
    orig_shape = x.shape
    in_features = orig_shape[-1]
    n = math.prod(orig_shape[:-1]) if len(orig_shape) > 1 else 1
    hidden = w0.shape[1]

    # Pad the tiny contraction dim up to a sublane multiple for a clean MXU K.
    k_pad = max(8, ((input_ch + 7) // 8) * 8)

    # Point-on-lane layout: (input_ch, N), zero-padded to (k_pad, n128).
    # Under jit the slice + transpose + cast + pad fuse into one HBM pass.
    x2d = x.reshape(n, in_features)
    xT = x2d[:, :input_ch].T.astype(compute_dtype)    # (input_ch, n)

    # Pad N only up to a multiple of 128 (lane width), never a full tile.
    n128 = ((n + 127) // 128) * 128
    xT = jnp.pad(xT, ((0, k_pad - input_ch), (0, n128 - n)))

    # Tile: large to amortize per-step overhead, multiple of 128, clamped to
    # the aligned problem size.  Keep >= 2 grid steps when possible so v7x's
    # two TensorCores are both fed by the "parallel" grid axis.
    tile = max(128, (int(tile_n) // 128) * 128)
    tile = min(tile, n128)
    if n128 >= 256 and tile >= n128:
        tile = ((n128 // 2 + 127) // 128) * 128
    grid = (pl.cdiv(n128, tile),)

    # Weights: resident (same block every step), transposed, compute dtype.
    w0T = jnp.pad(w0.T.astype(compute_dtype),
                  ((0, 0), (0, k_pad - input_ch)))    # (hidden, k_pad)
    w1T = w1.T.astype(compute_dtype)                  # (hidden, hidden)
    w2T = w2.T.astype(compute_dtype)                  # (1, hidden)

    out = pl.pallas_call(
        _nerf_small_kernel,
        out_shape=jax.ShapeDtypeStruct((1, n128), jnp.float32),
        grid_spec=pltpu.PrefetchScalarGridSpec(
            num_scalar_prefetch=0,
            grid=grid,
            in_specs=[
                pl.BlockSpec((k_pad, tile), lambda i: (0, i)),
                pl.BlockSpec((hidden, k_pad), lambda i: (0, 0)),
                pl.BlockSpec((hidden, hidden), lambda i: (0, 0)),
                pl.BlockSpec((1, hidden), lambda i: (0, 0)),
            ],
            out_specs=pl.BlockSpec((1, tile), lambda i: (0, i)),
        ),
        compiler_params=pltpu.CompilerParams(
            dimension_semantics=("parallel",),
            # Mainly for v5e's 16 MiB scoped-VMEM default; <= v7x physical.
            vmem_limit_bytes=64 * 1024 * 1024,
        ),
    )(xT, w0T, w1T, w2T)

    # (1, n) and (n, 1) share the same linear order -> reshape is free.
    sigma = out[0, :n]
    return sigma.reshape(orig_shape[:-1] + (1,))


def _reference_forward(x, w0, w1, w2, input_ch=3):
    h = x[..., :input_ch].astype(jnp.float32)
    for w in (w0, w1, w2):
        h = jnp.maximum(
            jnp.dot(h, w, precision=jax.lax.Precision.HIGHEST), 0.0)
    return h


if __name__ == "__main__":
    # Module hyperparameters (defaults of NeRFSmall).
    num_layers = 3
    hidden_dim = 64
    input_ch = 3

    key = jax.random.PRNGKey(0)
    k_x, k0, k1, k2 = jax.random.split(key, 4)

    # Small input: [batch, samples, channels]; extra trailing channel
    # exercises the x[..., :input_ch] slice.
    x = jax.random.normal(k_x, (2, 128, 4), dtype=jnp.float32)

    # Deterministic weights, stored as (in_dim, out_dim) so the layer is h @ W
    # (torch Linear weight transposed). bias=False.
    def init_w(k, in_dim, out_dim):
        bound = 1.0 / jnp.sqrt(in_dim)
        return jax.random.uniform(k, (in_dim, out_dim), jnp.float32, -bound, bound)

    w0 = init_w(k0, input_ch, hidden_dim)    # layer 0: input_ch -> hidden_dim
    w1 = init_w(k1, hidden_dim, hidden_dim)  # layer 1: hidden_dim -> hidden_dim
    w2 = init_w(k2, hidden_dim, 1)           # layer 2: hidden_dim -> 1

    fwd = jax.jit(functools.partial(nerf_small_forward, input_ch=input_ch))
    sigma = fwd(x, w0, w1, w2)
    sigma = jax.block_until_ready(sigma)

    ref = _reference_forward(x, w0, w1, w2, input_ch=input_ch)
    assert sigma.shape == (2, 128, 1), sigma.shape
    # bf16 MXU path with f32 accumulation -> relaxed tolerance vs f32 HIGHEST.
    assert jnp.allclose(sigma, ref, atol=3e-2, rtol=3e-2), (
        "mismatch vs reference: max abs diff = "
        f"{float(jnp.max(jnp.abs(sigma - ref)))}")

    print("KERNEL_OK")
</pallas_src>

<mosaic_0001>
module attributes {stable_mosaic.version = 11 : i64} {
  func.func @_nerf_small_kernel(%arg0: i32, %arg1: memref<8x128xbf16, #tpu.memory_space<vmem>>, %arg2: memref<64x8xbf16, #tpu.memory_space<vmem>>, %arg3: memref<64x64xbf16, #tpu.memory_space<vmem>>, %arg4: memref<1x64xbf16, #tpu.memory_space<vmem>>, %arg5: memref<1x128xf32, #tpu.memory_space<vmem>>) attributes {dimension_semantics = [#tpu.dimension_semantics<parallel>], iteration_bounds = array<i64: 2>, scalar_prefetch = 0 : i64, scratch_operands = 0 : i64, tpu.core_type = #tpu.core_type<tc>, window_params = [{transform_indices = @transform_0, window_bounds = array<i64: 8, 128>}, {pipeline_mode = #tpu.pipeline_mode<synchronous>, transform_indices = @transform_1, window_bounds = array<i64: 64, 8>}, {pipeline_mode = #tpu.pipeline_mode<synchronous>, transform_indices = @transform_2, window_bounds = array<i64: 64, 64>}, {pipeline_mode = #tpu.pipeline_mode<synchronous>, transform_indices = @transform_3, window_bounds = array<i64: 1, 64>}, {transform_indices = @transform_4, window_bounds = array<i64: 1, 128>}]} {
    %c0 = arith.constant 0 : index
    %c0_0 = arith.constant 0 : index
    %0 = vector.load %arg1[%c0, %c0_0] : memref<8x128xbf16, #tpu.memory_space<vmem>>, vector<8x128xbf16>
    %c0_1 = arith.constant 0 : index
    %c0_2 = arith.constant 0 : index
    %1 = vector.load %arg2[%c0_1, %c0_2] : memref<64x8xbf16, #tpu.memory_space<vmem>>, vector<64x8xbf16>
    %cst = arith.constant dense<0.000000e+00> : vector<64x128xf32>
    %2 = tpu.matmul %1, %0, %cst {dimension_numbers = #tpu.dot_dimension_numbers<[1], [0], [0], [1], [0, 0, 1, 1], [], []>} : vector<64x8xbf16>, vector<8x128xbf16>, vector<64x128xf32> -> vector<64x128xf32>
    %cst_3 = arith.constant 0.000000e+00 : f32
    %3 = vector.broadcast %cst_3 : f32 to vector<64x128xf32>
    %4 = arith.maximumf %2, %3 : vector<64x128xf32>
    %c0_4 = arith.constant 0 : index
    %c0_5 = arith.constant 0 : index
    %5 = vector.load %arg3[%c0_4, %c0_5] : memref<64x64xbf16, #tpu.memory_space<vmem>>, vector<64x64xbf16>
    %6 = arith.truncf %4 : vector<64x128xf32> to vector<64x128xbf16>
    %cst_6 = arith.constant dense<0.000000e+00> : vector<64x128xf32>
    %7 = tpu.matmul %5, %6, %cst_6 {dimension_numbers = #tpu.dot_dimension_numbers<[1], [0], [0], [1], [0, 0, 1, 1], [], []>} : vector<64x64xbf16>, vector<64x128xbf16>, vector<64x128xf32> -> vector<64x128xf32>
    %cst_7 = arith.constant 0.000000e+00 : f32
    %8 = vector.broadcast %cst_7 : f32 to vector<64x128xf32>
    %9 = arith.maximumf %7, %8 : vector<64x128xf32>
    %c0_8 = arith.constant 0 : index
    %c0_9 = arith.constant 0 : index
    %10 = vector.load %arg4[%c0_8, %c0_9] : memref<1x64xbf16, #tpu.memory_space<vmem>>, vector<1x64xbf16>
    %11 = arith.truncf %9 : vector<64x128xf32> to vector<64x128xbf16>
    %cst_10 = arith.constant dense<0.000000e+00> : vector<1x128xf32>
    %12 = tpu.matmul %10, %11, %cst_10 {dimension_numbers = #tpu.dot_dimension_numbers<[1], [0], [0], [1], [0, 0, 1, 1], [], []>} : vector<1x64xbf16>, vector<64x128xbf16>, vector<1x128xf32> -> vector<1x128xf32>
    %cst_11 = arith.constant 0.000000e+00 : f32
    %13 = vector.broadcast %cst_11 : f32 to vector<1x128xf32>
    %14 = arith.maximumf %12, %13 : vector<1x128xf32>
    %c0_12 = arith.constant 0 : index
    %c0_13 = arith.constant 0 : index
    %15 = vector.load %arg5[%c0_12, %c0_13] : memref<1x128xf32, #tpu.memory_space<vmem>>, vector<1x128xf32>
    tpu.vector_store %arg5[%c0_12, %c0_13], %14 {strides = array<i32>} : memref<1x128xf32, #tpu.memory_space<vmem>>, vector<1x128xf32>,
    return
  }
  func.func @transform_0(%arg0: i32) -> (i32, i32) {
    %c0_i32 = arith.constant 0 : i32
    %c0_i32_0 = arith.constant 0 : i32
    return %c0_i32, %arg0 : i32, i32
  }
  func.func @transform_1(%arg0: i32) -> (i32, i32) {
    %c0_i32 = arith.constant 0 : i32
    %c0_i32_0 = arith.constant 0 : i32
    %c0_i32_1 = arith.constant 0 : i32
    return %c0_i32, %c0_i32_0 : i32, i32
  }
  func.func @transform_2(%arg0: i32) -> (i32, i32) {
    %c0_i32 = arith.constant 0 : i32
    %c0_i32_0 = arith.constant 0 : i32
    %c0_i32_1 = arith.constant 0 : i32
    return %c0_i32, %c0_i32_0 : i32, i32
  }
  func.func @transform_3(%arg0: i32) -> (i32, i32) {
    %c0_i32 = arith.constant 0 : i32
    %c0_i32_0 = arith.constant 0 : i32
    %c0_i32_1 = arith.constant 0 : i32
    return %c0_i32, %c0_i32_0 : i32, i32
  }
  func.func @transform_4(%arg0: i32) -> (i32, i32) {
    %c0_i32 = arith.constant 0 : i32
    %c0_i32_0 = arith.constant 0 : i32
    return %c0_i32, %arg0 : i32, i32
  }
}

</mosaic_0001>

<llo_original>
// kernel: nerf_small_forward.1
$region0: #{nerf_small_forward.1}
  #allocation0 [shape = 'u32[]', space=smem, size = 0x4, offset = 0x4, fixed_abs, tag = 'smem constant byte address 0x4 - core index']
  #allocation1 [shape = 'u32[144,128]{1,0:T(1,128)}', space=vmem, size = 0x12000, scoped, tag = 'internal scratch']
  %s0 = inlined_call_operand.hbm [shape: bf16[8,256], index: 0, kind: input, shape index: {}]
  %s1 = inlined_call_operand.hbm [shape: bf16[64,8], index: 1, kind: input, shape index: {}]
  %s2 = inlined_call_operand.hbm [shape: bf16[64,64], index: 2, kind: input, shape index: {}]
  %s3 = inlined_call_operand.hbm [shape: bf16[1,64], index: 3, kind: input, shape index: {}]
  %s4 = inlined_call_operand.hbm [shape: f32[1,256], index: 4, kind: output, shape index: {}]
  %s5 = sld [smem:[#allocation0]]
  $region65: #{nerf_small_forward.1} parent=0
    _
  %s7 = ssub.s32 1, %s5
  %s8 = scalar_select 0, %s7, %s5
  $region1: #{nerf_small_forward.1} parent=0
    #allocation2 [shape = 'u8[4096]{0}', space=vmem, size = 0x1000, scoped, tag = 'input window, operand 0']
    #allocation3 [shape = 's32[2]{0}', space=sflag, size = 0x8, scoped, tag = 'scoped memory for nerf_small_forward.1']
    #allocation4 [shape = 's32[2]{0}', space=sflag, size = 0x8, scoped, tag = 'scoped memory for nerf_small_forward.1']
    #allocation5 [shape = 'u8[16384]{0}', space=vmem, size = 0x4000, scoped, tag = 'input window, operand 1, single buffered']
    #allocation6 [shape = 's32[1]{0}', space=sflag, size = 0x4, scoped, tag = 'scoped memory for nerf_small_forward.1']
    #allocation7 [shape = 'u8[16384]{0}', space=vmem, size = 0x4000, scoped, tag = 'input window, operand 2, single buffered']
    #allocation8 [shape = 'u8[512]{0}', space=vmem, size = 0x400, scoped, tag = 'input window, operand 3, single buffered']
    #allocation9 [shape = 's32[1]{0}', space=sflag, size = 0x4, scoped, tag = 'scoped memory for nerf_small_forward.1']
    #allocation10 [shape = 'u8[1024]{0}', space=vmem, size = 0x400, scoped, tag = 'output window, operand 0']
    %9 = vsyncpa [#allocation3], 0
    %s10 = scalar_lea.sflag [#allocation3], 1
    %11 = vsyncpa %s10, 0
    %12 = vsyncpa [#allocation6], 0
    %13 = vsyncpa [#allocation9], 0
    %14 = vsyncpa [#allocation4], 0
    %s15 = scalar_lea.sflag [#allocation4], 1
    %16 = vsyncpa %s15, 0
    loop: start=0, step=1, limit=4
    $region2: #{nerf_small_forward.1} parent=1 // loop_pre_header
      _
    $region3: #{nerf_small_forward.1} parent=1 // loop_header
      %s18 = sphi 0, %s22
      %p19 = scmp.ge.s32.totalorder %s18, 4
      %s28 = sphi 0, %s30
      %s31 = sphi 0, %s28
      %s32 = sphi 0, %s31
      %s48 = sphi 0, %s32
      %s52 = sphi 0, %s52
      %s54 = sphi 0, %s52
      %s55 = sphi 0, %s54
      %s69 = sphi 0, %s55
      %s73 = sphi 0, %s73
      %s75 = sphi 0, %s73
      %s76 = sphi 0, %s75
      %s90 = sphi 0, %s76
      %s94 = sphi 0, %s94
      %s96 = sphi 0, %s94
      %s97 = sphi 0, %s96
      %s111 = sphi 0, %s97
      %s117 = sphi 0, %s119
      %s120 = sphi 0, %s117
      %s121 = sphi 0, %s120
      %s137 = sphi 0, %s121
    $region4: #{nerf_small_forward.1} parent=1 // loop_header_branch
      %21 = sbr.rel (%p19) target = $region8
    $region5: #{nerf_small_forward.1} parent=1 // loop_body
      %s23 = ssub.s32 %s18, 1
      %s24 = ssub.s32 %s18, 2
      %s25 = sadd.s32 %s18, 1
      %s26 = ssub.s32 %s18, %s25
      %p27 = scmp.eq.s32.totalorder %s26, 0
      %s29 = sadd.s32 %s28, 1
      %s30 = scalar_select %p27, %s28, %s29
      %p33 = pneg %p27
      %p34 = scmp.eq.s32.totalorder %s18, 1
      %p35 = por %p33, %p34
      %p36 = scmp.ne.s32.totalorder %s28, %s31
      %p37 = scmp.eq.s32.totalorder %s18, 0
      %p38 = por %p36, %p37
      %p39 = scmp.ne.s32.totalorder %s28, %s31
      %p40 = scmp.eq.s32.totalorder %s23, 1
      %p41 = por %p39, %p40
      %p42 = scmp.ne.s32.totalorder %s31, %s32
      %p43 = scmp.eq.s32.totalorder %s23, 0
      %p44 = por %p42, %p43
      %p45 = scmp.ne.s32.totalorder %s31, %s32
      %p46 = scmp.eq.s32.totalorder %s24, 1
      %p47 = por %p45, %p46
      %p49 = scmp.ne.s32.totalorder %s32, %s48
      %p50 = scmp.eq.s32.totalorder %s24, 0
      %p51 = por %p49, %p50
      %s53 = sadd.s32 %s52, 1
      %p56 = scmp.eq.s32.totalorder %s18, 1
      %p57 = scmp.ne.s32.totalorder %s52, %s54
      %p58 = scmp.eq.s32.totalorder %s18, 0
      %p59 = por %p57, %p58
      %p60 = scmp.ne.s32.totalorder %s52, %s54
      %p61 = scmp.eq.s32.totalorder %s23, 1
      %p62 = por %p60, %p61
      %p63 = scmp.ne.s32.totalorder %s54, %s55
      %p64 = scmp.eq.s32.totalorder %s23, 0
      %p65 = por %p63, %p64
      %p66 = scmp.ne.s32.totalorder %s54, %s55
      %p67 = scmp.eq.s32.totalorder %s24, 1
      %p68 = por %p66, %p67
      %p70 = scmp.ne.s32.totalorder %s55, %s69
      %p71 = scmp.eq.s32.totalorder %s24, 0
      %p72 = por %p70, %p71
      %s74 = sadd.s32 %s73, 1
      %p77 = scmp.eq.s32.totalorder %s18, 1
      %p78 = scmp.ne.s32.totalorder %s73, %s75
      %p79 = scmp.eq.s32.totalorder %s18, 0
      %p80 = por %p78, %p79
      %p81 = scmp.ne.s32.totalorder %s73, %s75
      %p82 = scmp.eq.s32.totalorder %s23, 1
      %p83 = por %p81, %p82
      %p84 = scmp.ne.s32.totalorder %s75, %s76
      %p85 = scmp.eq.s32.totalorder %s23, 0
      %p86 = por %p84, %p85
      %p87 = scmp.ne.s32.totalorder %s75, %s76
      %p88 = scmp.eq.s32.totalorder %s24, 1
      %p89 = por %p87, %p88
      %p91 = scmp.ne.s32.totalorder %s76, %s90
      %p92 = scmp.eq.s32.totalorder %s24, 0
      %p93 = por %p91, %p92
      %s95 = sadd.s32 %s94, 1
      %p98 = scmp.eq.s32.totalorder %s18, 1
      %p99 = scmp.ne.s32.totalorder %s94, %s96
      %p100 = scmp.eq.s32.totalorder %s18, 0
      %p101 = por %p99, %p100
      %p102 = scmp.ne.s32.totalorder %s94, %s96
      %p103 = scmp.eq.s32.totalorder %s23, 1
      %p104 = por %p102, %p103
      %p105 = scmp.ne.s32.totalorder %s96, %s97
      %p106 = scmp.eq.s32.totalorder %s23, 0
      %p107 = por %p105, %p106
      %p108 = scmp.ne.s32.totalorder %s96, %s97
      %p109 = scmp.eq.s32.totalorder %s24, 1
      %p110 = por %p108, %p109
      %p112 = scmp.ne.s32.totalorder %s97, %s111
      %p113 = scmp.eq.s32.totalorder %s24, 0
      %p114 = por %p112, %p113
      %s115 = ssub.s32 %s18, %s25
      %p116 = scmp.eq.s32.totalorder %s115, 0
      %s118 = sadd.s32 %s117, 1
      %s119 = scalar_select %p116, %s117, %s118
      %p122 = pneg %p116
      %p123 = scmp.eq.s32.totalorder %s18, 1
      %p124 = por %p122, %p123
      %p125 = scmp.ne.s32.totalorder %s117, %s120
      %p126 = scmp.eq.s32.totalorder %s18, 0
      %p127 = por %p125, %p126
      %p128 = scmp.ne.s32.totalorder %s117, %s120
      %p129 = scmp.eq.s32.totalorder %s23, 1
      %p130 = por %p128, %p129
      %p131 = scmp.ne.s32.totalorder %s120, %s121
      %p132 = scmp.eq.s32.totalorder %s23, 0
      %p133 = por %p131, %p132
      %p134 = scmp.ne.s32.totalorder %s120, %s121
      %p135 = scmp.eq.s32.totalorder %s24, 1
      %p136 = por %p134, %p135
      %p138 = scmp.ne.s32.totalorder %s121, %s137
      %p139 = scmp.eq.s32.totalorder %s24, 0
      %p140 = por %p138, %p139
      %p141 = scmp.le.s32.totalorder 1, %s18
      %p142 = scmp.lt.s32.totalorder %s18, 3
      %p143 = pnand %p141, %p142
      %p144 = pneg %p143
      // Predicated region
      $region9: #{nerf_small_forward.1} parent=5 // pred_check
        _
      $region10: #{nerf_small_forward.1} parent=5 // pred_check_branch
        %146 = sbr.rel (%p143) target = $region12
      $region11: #{nerf_small_forward.1} parent=5 // pred_region
        %s147 = ssub.s32 %s18, 1
        // Predicated region
        $region13: #{nerf_small_forward.1} parent=11 // pred_check
          %p148 = pneg %p65
        $region14: #{nerf_small_forward.1} parent=11 // pred_check_branch
          %150 = sbr.rel (%p148) target = $region16
        $region15: #{nerf_small_forward.1} parent=11 // pred_region
          %s152 = ssub.s32 512, 512
          %153 = vsyncadd [#allocation6], %s152
          %s154 = sshll.u32 [#allocation5], 4
          %s155 = int_to_ptr.vmem [resolvable:$true] %s154
          %160 = dma.hbm_to_vmem [thread:$0]  %s1, 512, %s155, [#allocation6], 64, 64, 4
        $region16: #{nerf_small_forward.1} parent=11 // pred_fallthru
          _
        // Predicated region
        $region17: #{nerf_small_forward.1} parent=11 // pred_check
          %p161 = pneg %p86
        $region18: #{nerf_small_forward.1} parent=11 // pred_check_branch
          %163 = sbr.rel (%p161) target = $region20
        $region19: #{nerf_small_forward.1} parent=11 // pred_region
          %s165 = ssub.s32 512, 512
          %166 = vsyncadd [#allocation6], %s165
          %s167 = sshll.u32 [#allocation7], 4
          %s168 = int_to_ptr.vmem [resolvable:$true] %s167
          %173 = dma.hbm_to_vmem [thread:$0]  %s2, 512, %s168, [#allocation6], 64, 64, 4
        $region20: #{nerf_small_forward.1} parent=11 // pred_fallthru
          _
        // Predicated region
        $region21: #{nerf_small_forward.1} parent=11 // pred_check
          %p174 = pneg %p107
        $region22: #{nerf_small_forward.1} parent=11 // pred_check_branch
          %176 = sbr.rel (%p174) target = $region24
        $region23: #{nerf_small_forward.1} parent=11 // pred_region
          %s178 = ssub.s32 16, 16
          %179 = vsyncadd [#allocation9], %s178
          %s181 = sshll.u32 [#allocation8], 4
          %s182 = int_to_ptr.vmem [resolvable:$true] %s181
          %184 = dma.hbm_to_vmem [thread:$0]  %s3, 16, %s182, [#allocation9]
        $region24: #{nerf_small_forward.1} parent=11 // pred_fallthru
          _
      $region12: #{nerf_small_forward.1} parent=5 // pred_fallthru
        _
      %p185 = scmp.lt.s32.totalorder %s18, 2
      // Predicated region
      $region25: #{nerf_small_forward.1} parent=5 // pred_check
        %p186 = pneg %p185
      $region26: #{nerf_small_forward.1} parent=5 // pred_check_branch
        %188 = sbr.rel (%p186) target = $region28
      $region27: #{nerf_small_forward.1} parent=5 // pred_region
        // Predicated region
        $region29: #{nerf_small_forward.1} parent=27 // pred_check
          %p189 = pneg %p38
        $region30: #{nerf_small_forward.1} parent=27 // pred_check_branch
          %191 = sbr.rel (%p189) target = $region32
        $region31: #{nerf_small_forward.1} parent=27 // pred_region
          %s192 = sand.u32 %s28, 1
          %s193 = scalar_lea.sflag [#allocation3], %s192
          %s194 = sand.u32 %s28, 1
          %s195 = smul.addr %s194, 4
          %s196 = scalar_lea.vmem [#allocation2], %s195
          %s198 = ssub.s32 64, 64
          %199 = vsyncadd %s193, %s198
          %s200 = smul.addr %s18, 64
          %s201 = scalar_lea.hbm %s0, %s200
          %s203 = sshll.u32 %s196, 4
          %s204 = int_to_ptr.vmem [resolvable:$true] %s203
          %206 = dma.hbm_to_vmem [thread:$0]  %s201, 64, %s204, %s193
        $region32: #{nerf_small_forward.1} parent=27 // pred_fallthru
          _
      $region28: #{nerf_small_forward.1} parent=5 // pred_fallthru
        _
      %p207 = scmp.le.s32.totalorder 1, %s18
      %p208 = scmp.lt.s32.totalorder %s18, 3
      %p209 = pnand %p207, %p208
      %p210 = pneg %p209
      // Predicated region
      $region33: #{nerf_small_forward.1} parent=5 // pred_check
        _
      $region34: #{nerf_small_forward.1} parent=5 // pred_check_branch
        %212 = sbr.rel (%p209) target = $region36
      $region35: #{nerf_small_forward.1} parent=5 // pred_region
        %s213 = ssub.s32 %s18, 1
        %s214 = sand.u32 %s31, 1
        %s215 = scalar_lea.sflag [#allocation3], %s214
        %s216 = sand.u32 %s31, 1
        %s217 = smul.addr %s216, 4
        %s218 = scalar_lea.vmem [#allocation2], %s217
        // Predicated region
        $region37: #{nerf_small_forward.1} parent=35 // pred_check
          %p219 = pneg %p44
        $region38: #{nerf_small_forward.1} parent=35 // pred_check_branch
          %221 = sbr.rel (%p219) target = $region40
        $region39: #{nerf_small_forward.1} parent=35 // pred_region
          %222 = dma.done %s215, 64
        $region40: #{nerf_small_forward.1} parent=35 // pred_fallthru
          _
        // Predicated region
        $region41: #{nerf_small_forward.1} parent=35 // pred_check
          %p223 = pneg %p65
        $region42: #{nerf_small_forward.1} parent=35 // pred_check_branch
          %225 = sbr.rel (%p223) target = $region44
        $region43: #{nerf_small_forward.1} parent=35 // pred_region
          %226 = dma.done [#allocation6], 512
        $region44: #{nerf_small_forward.1} parent=35 // pred_fallthru
          _
        // Predicated region
        $region45: #{nerf_small_forward.1} parent=35 // pred_check
          %p227 = pneg %p86
        $region46: #{nerf_small_forward.1} parent=35 // pred_check_branch
          %229 = sbr.rel (%p227) target = $region48
        $region47: #{nerf_small_forward.1} parent=35 // pred_region
          %230 = dma.done [#allocation6], 512
        $region48: #{nerf_small_forward.1} parent=35 // pred_fallthru
          _
        // Predicated region
        $region49: #{nerf_small_forward.1} parent=35 // pred_check
          %p231 = pneg %p107
        $region50: #{nerf_small_forward.1} parent=35 // pred_check_branch
          %233 = sbr.rel (%p231) target = $region52
        $region51: #{nerf_small_forward.1} parent=35 // pred_region
          %234 = dma.done [#allocation9], 16
        $region52: #{nerf_small_forward.1} parent=35 // pred_fallthru
          _
        %s235 = sand.u32 %s31, 1
        %s236 = scalar_lea.sflag [#allocation3], %s235
        %s237 = sand.u32 %s31, 1
        %s238 = smul.addr %s237, 4
        %s239 = scalar_lea.vmem [#allocation2], %s238
        %p240 = pneg %p44
        %p241 = pneg %p41
        %p242 = pneg %p65
        %p243 = pneg %p62
        %p244 = pneg %p86
        %p245 = pneg %p83
        %p246 = pneg %p107
        %p247 = pneg %p104
        %p248 = pneg %p133
        %p249 = pneg %p130
        %s250 = sand.u32 %s120, 1
        %s251 = scalar_lea.sflag [#allocation4], %s250
        %s252 = sand.u32 %s120, 1
        %s253 = scalar_lea.vmem [#allocation10], %s252
        %v255 = vld [vmem:[%s218] sm:$0xf]
        %v256 = vld [vmem:[#allocation5] sm:$0xf]
        %v257 = vld [vmem:[#allocation5 + $0x4] sm:$0xf]
        %v258 = vld [vmem:[#allocation5 + $0x8] sm:$0xf]
        %v259 = vld [vmem:[#allocation5 + $0xc] sm:$0xf]
        %v260 = vld [vmem:[#allocation5 + $0x10] sm:$0xf]
        %v261 = vld [vmem:[#allocation5 + $0x14] sm:$0xf]
        %v262 = vld [vmem:[#allocation5 + $0x18] sm:$0xf]
        %v263 = vld [vmem:[#allocation5 + $0x1c] sm:$0xf]
        %v272 = vunpack.c.l.b16 %v256
        %v273 = vunpack.c.l.b16 %v257
        %v274 = vunpack.c.l.b16 %v258
        %v275 = vunpack.c.l.b16 %v259
        %v276 = vunpack.c.l.b16 %v260
        %v277 = vunpack.c.l.b16 %v261
        %v278 = vunpack.c.l.b16 %v262
        %v279 = vunpack.c.l.b16 %v263
        %v280 = vpack.c.b16 %v273, %v272
        %v281 = vpack.c.b16 %v275, %v274
        %v282 = vpack.c.b16 %v277, %v276
        %v283 = vpack.c.b16 %v279, %v278
        %vm284 = vcmask 64512
        %v286 = vsel %vm284, %v280, 0
        %v289 = vsel %vm284, %v281, 0
        %v292 = vsel %vm284, %v282, 0
        %v295 = vsel %vm284, %v283, 0
        %vm297 = vcmask 1043456
        %v299 = vsel %vm297, %v255, 0
        %301 = vmatprep.subr.bf16.mxu0 0
        %302 = vmatpush1.bf16.msra.mxu0 %v299
        %303 = vmatprep.subr.bf16.mxu0 0
        %304 = vmatpush1.bf16.msra.mxu0 0
        %305 = vmatprep.subr.bf16.mxu0 0
        %306 = vmatpush1.bf16.msra.mxu0 0
        %307 = vmatprep.subr.bf16.mxu0 0
        %308 = vmatpush1.bf16.msra.mxu0 0
        %309 = vmatprep.subr.bf16.mxu0 0
        %310 = vmatpush1.bf16.msra.mxu0 0
        %311 = vmatprep.subr.bf16.mxu0 0
        %312 = vmatpush1.bf16.msra.mxu0 0
        %313 = vmatprep.subr.bf16.mxu0 0
        %314 = vmatpush1.bf16.msra.mxu0 0
        %315 = vmatprep.subr.bf16.mxu0 0
        %316 = vmatpush1.bf16.msra.mxu0 0
        %317 = vmatprep.subr.bf16.mxu0 0
        %318 = vmatpush1.bf16.msra.mxu0 0
        %319 = vmatprep.subr.bf16.mxu0 0
        %320 = vmatpush1.bf16.msra.mxu0 0
        %321 = vmatprep.subr.bf16.mxu0 0
        %322 = vmatpush1.bf16.msra.mxu0 0
        %323 = vmatprep.subr.bf16.mxu0 0
        %324 = vmatpush1.bf16.msra.mxu0 0
        %325 = vmatprep.subr.bf16.mxu0 0
        %326 = vmatpush1.bf16.msra.mxu0 0
        %327 = vmatprep.subr.bf16.mxu0 0
        %328 = vmatpush1.bf16.msra.mxu0 0
        %329 = vmatprep.subr.bf16.mxu0 0
        %330 = vmatpush1.bf16.msra.mxu0 0
        %331 = vmatprep.subr.bf16.mxu0 0
        %332 = vmatpush1.bf16.msra.mxu0 0
        %333 = vmatprep.mubr.bf16.mxu0 0
        %334 = vmatmul.mubr.bf16.gmra.mrb[0].mxu0 %v286
        %v335 = vpop.f32.mrb[0].mxu0
        %v336 = vadd.f32 0.0, %v335
        %v337 = vpop.f32.mrb[0].mxu0
        %v338 = vpop.f32.mrb[0].mxu0
        %v339 = vadd.f32 0.0, %v338
        %v340 = vpop.f32.mrb[0].mxu0
        %341 = vmatprep.mubr.bf16.mxu0 0
        %342 = vmatmul.mubr.bf16.gmra.mrb[0].mxu0 %v289
        %v343 = vpop.f32.mrb[0].mxu0
        %v344 = vadd.f32 0.0, %v343
        %v345 = vpop.f32.mrb[0].mxu0
        %v346 = vpop.f32.mrb[0].mxu0
        %v347 = vadd.f32 0.0, %v346
        %v348 = vpop.f32.mrb[0].mxu0
        %349 = vmatprep.mubr.bf16.mxu0 0
        %350 = vmatmul.mubr.bf16.gmra.mrb[0].mxu0 %v292
        %v351 = vpop.f32.mrb[0].mxu0
        %v352 = vadd.f32 0.0, %v351
        %v353 = vpop.f32.mrb[0].mxu0
        %v354 = vpop.f32.mrb[0].mxu0
        %v355 = vadd.f32 0.0, %v354
        %v356 = vpop.f32.mrb[0].mxu0
        %357 = vmatprep.mubr.bf16.mxu0 0
        %358 = vmatmul.mubr.bf16.gmra.mrb[0].mxu0 %v295
        %v359 = vpop.f32.mrb[0].mxu0
        %v360 = vadd.f32 0.0, %v359
        %v361 = vpop.f32.mrb[0].mxu0
        %v362 = vpop.f32.mrb[0].mxu0
        %v363 = vadd.f32 0.0, %v362
        %v364 = vpop.f32.mrb[0].mxu0
        %365 = vdwg.mxu0
        %v366 = vmax.f32 %v336, 0.0
        %v367 = vmax.f32 %v339, 0.0
        %v368 = vmax.f32 %v344, 0.0
        %v369 = vmax.f32 %v347, 0.0
        %v370 = vmax.f32 %v352, 0.0
        %v371 = vmax.f32 %v355, 0.0
        %v372 = vmax.f32 %v360, 0.0
        %v373 = vmax.f32 %v363, 0.0
        %v374 = vld [vmem:[#allocation7] sm:$0xf]
        %v375 = vld [vmem:[#allocation7 + $0x4] sm:$0xf]
        %v376 = vld [vmem:[#allocation7 + $0x8] sm:$0xf]
        %v377 = vld [vmem:[#allocation7 + $0xc] sm:$0xf]
        %v378 = vld [vmem:[#allocation7 + $0x10] sm:$0xf]
        %v379 = vld [vmem:[#allocation7 + $0x14] sm:$0xf]
        %v380 = vld [vmem:[#allocation7 + $0x18] sm:$0xf]
        %v381 = vld [vmem:[#allocation7 + $0x1c] sm:$0xf]
        %v382 = vpack.c.bf16 %v367, %v366
        %v383 = vpack.c.bf16 %v369, %v368
        %v384 = vpack.c.bf16 %v371, %v370
        %v385 = vpack.c.bf16 %v373, %v372
        %v394 = vunpack.c.l.b16 %v374
        %v395 = vunpack.c.l.b16 %v375
        %v396 = vunpack.c.l.b16 %v376
        %v397 = vunpack.c.l.b16 %v377
        %v398 = vunpack.c.l.b16 %v378
        %v399 = vunpack.c.l.b16 %v379
        %v400 = vunpack.c.l.b16 %v380
        %v401 = vunpack.c.l.b16 %v381
        %v402 = vpack.c.b16 %v395, %v394
        %v403 = vpack.c.b16 %v397, %v396
        %v404 = vpack.c.b16 %v399, %v398
        %v405 = vpack.c.b16 %v401, %v400
        %vm406 = vcmask 523264
        %v408 = vsel %vm406, %v402, 0
        %v411 = vsel %vm406, %v403, 0
        %v414 = vsel %vm406, %v404, 0
        %v417 = vsel %vm406, %v405, 0
        %419 = vmatprep.subr.bf16.mxu0 0
        %420 = vmatpush1.bf16.msra.mxu0 %v382
        %421 = vmatprep.subr.bf16.mxu0 0
        %422 = vmatpush1.bf16.msra.mxu0 %v383
        %423 = vmatprep.subr.bf16.mxu0 0
        %424 = vmatpush1.bf16.msra.mxu0 %v384
        %425 = vmatprep.subr.bf16.mxu0 0
        %426 = vmatpush1.bf16.msra.mxu0 %v385
        %427 = vmatprep.subr.bf16.mxu0 0
        %428 = vmatpush1.bf16.msra.mxu0 0
        %429 = vmatprep.subr.bf16.mxu0 0
        %430 = vmatpush1.bf16.msra.mxu0 0
        %431 = vmatprep.subr.bf16.mxu0 0
        %432 = vmatpush1.bf16.msra.mxu0 0
        %433 = vmatprep.subr.bf16.mxu0 0
        %434 = vmatpush1.bf16.msra.mxu0 0
        %435 = vmatprep.subr.bf16.mxu0 0
        %436 = vmatpush1.bf16.msra.mxu0 0
        %437 = vmatprep.subr.bf16.mxu0 0
        %438 = vmatpush1.bf16.msra.mxu0 0
        %439 = vmatprep.subr.bf16.mxu0 0
        %440 = vmatpush1.bf16.msra.mxu0 0
        %441 = vmatprep.subr.bf16.mxu0 0
        %442 = vmatpush1.bf16.msra.mxu0 0
        %443 = vmatprep.subr.bf16.mxu0 0
        %444 = vmatpush1.bf16.msra.mxu0 0
        %445 = vmatprep.subr.bf16.mxu0 0
        %446 = vmatpush1.bf16.msra.mxu0 0
        %447 = vmatprep.subr.bf16.mxu0 0
        %448 = vmatpush1.bf16.msra.mxu0 0
        %449 = vmatprep.subr.bf16.mxu0 0
        %450 = vmatpush1.bf16.msra.mxu0 0
        %451 = vmatprep.mubr.bf16.mxu0 0
        %452 = vmatmul.mubr.bf16.gmra.mrb[0].mxu0 %v408
        %v453 = vpop.f32.mrb[0].mxu0
        %v454 = vadd.f32 0.0, %v453
        %v455 = vpop.f32.mrb[0].mxu0
        %v456 = vpop.f32.mrb[0].mxu0
        %v457 = vadd.f32 0.0, %v456
        %v458 = vpop.f32.mrb[0].mxu0
        %459 = vmatprep.mubr.bf16.mxu0 0
        %460 = vmatmul.mubr.bf16.gmra.mrb[0].mxu0 %v411
        %v461 = vpop.f32.mrb[0].mxu0
        %v462 = vadd.f32 0.0, %v461
        %v463 = vpop.f32.mrb[0].mxu0
        %v464 = vpop.f32.mrb[0].mxu0
        %v465 = vadd.f32 0.0, %v464
        %v466 = vpop.f32.mrb[0].mxu0
        %467 = vmatprep.mubr.bf16.mxu0 0
        %468 = vmatmul.mubr.bf16.gmra.mrb[0].mxu0 %v414
        %v469 = vpop.f32.mrb[0].mxu0
        %v470 = vadd.f32 0.0, %v469
        %v471 = vpop.f32.mrb[0].mxu0
        %v472 = vpop.f32.mrb[0].mxu0
        %v473 = vadd.f32 0.0, %v472
        %v474 = vpop.f32.mrb[0].mxu0
        %475 = vmatprep.mubr.bf16.mxu0 0
        %476 = vmatmul.mubr.bf16.gmra.mrb[0].mxu0 %v417
        %v477 = vpop.f32.mrb[0].mxu0
        %v478 = vadd.f32 0.0, %v477
        %v479 = vpop.f32.mrb[0].mxu0
        %v480 = vpop.f32.mrb[0].mxu0
        %v481 = vadd.f32 0.0, %v480
        %v482 = vpop.f32.mrb[0].mxu0
        %483 = vdwg.mxu0
        %v484 = vmax.f32 %v454, 0.0
        %v485 = vmax.f32 %v457, 0.0
        %v486 = vmax.f32 %v462, 0.0
        %v487 = vmax.f32 %v465, 0.0
        %v488 = vmax.f32 %v470, 0.0
        %v489 = vmax.f32 %v473, 0.0
        %v490 = vmax.f32 %v478, 0.0
        %v491 = vmax.f32 %v481, 0.0
        %v492 = vld [vmem:[#allocation8] sm:$0x1]
        %v493 = vpack.c.bf16 %v485, %v484
        %v494 = vpack.c.bf16 %v487, %v486
        %v495 = vpack.c.bf16 %v489, %v488
        %v496 = vpack.c.bf16 %v491, %v490
        %v498 = vsel %vm406, %v492, 0
        %500 = vmatprep.subr.bf16.mxu0 0
        %501 = vmatpush1.bf16.msra.mxu0 %v493
        %502 = vmatprep.subr.bf16.mxu0 0
        %503 = vmatpush1.bf16.msra.mxu0 %v494
        %504 = vmatprep.subr.bf16.mxu0 0
        %505 = vmatpush1.bf16.msra.mxu0 %v495
        %506 = vmatprep.subr.bf16.mxu0 0
        %507 = vmatpush1.bf16.msra.mxu0 %v496
        %508 = vmatprep.subr.bf16.mxu0 0
        %509 = vmatpush1.bf16.msra.mxu0 0
        %510 = vmatprep.subr.bf16.mxu0 0
        %511 = vmatpush1.bf16.msra.mxu0 0
        %512 = vmatprep.subr.bf16.mxu0 0
        %513 = vmatpush1.bf16.msra.mxu0 0
        %514 = vmatprep.subr.bf16.mxu0 0
        %515 = vmatpush1.bf16.msra.mxu0 0
        %516 = vmatprep.subr.bf16.mxu0 0
        %517 = vmatpush1.bf16.msra.mxu0 0
        %518 = vmatprep.subr.bf16.mxu0 0
        %519 = vmatpush1.bf16.msra.mxu0 0
        %520 = vmatprep.subr.bf16.mxu0 0
        %521 = vmatpush1.bf16.msra.mxu0 0
        %522 = vmatprep.subr.bf16.mxu0 0
        %523 = vmatpush1.bf16.msra.mxu0 0
        %524 = vmatprep.subr.bf16.mxu0 0
        %525 = vmatpush1.bf16.msra.mxu0 0
        %526 = vmatprep.subr.bf16.mxu0 0
        %527 = vmatpush1.bf16.msra.mxu0 0
        %528 = vmatprep.subr.bf16.mxu0 0
        %529 = vmatpush1.bf16.msra.mxu0 0
        %530 = vmatprep.subr.bf16.mxu0 0
        %531 = vmatpush1.bf16.msra.mxu0 0
        %532 = vmatprep.mubr.bf16.mxu0 0
        %533 = vmatmul.mubr.bf16.gmra.mrb[0].mxu0 %v498
        %v534 = vpop.f32.mrb[0].mxu0
        %v535 = vadd.f32 0.0, %v534
        %v536 = vpop.f32.mrb[0].mxu0
        %v537 = vpop.f32.mrb[0].mxu0
        %v538 = vpop.f32.mrb[0].mxu0
        %539 = vdwg.mxu0
        %v540 = vmax.f32 %v535, 0.0
        %541 = vst [vmem:[%s253] sm:$0x1] %v540
        %s542 = sand.u32 %s120, 1
        %s543 = scalar_lea.sflag [#allocation4], %s542
        %s544 = sand.u32 %s120, 1
        %s545 = scalar_lea.vmem [#allocation10], %s544
        // Predicated region
        $region53: #{nerf_small_forward.1} parent=35 // pred_check
          %p546 = pneg %p130
        $region54: #{nerf_small_forward.1} parent=35 // pred_check_branch
          %548 = sbr.rel (%p546) target = $region56
        $region55: #{nerf_small_forward.1} parent=35 // pred_region
          %s550 = ssub.s32 16, 16
          %551 = vsyncadd %s543, %s550
          %s552 = smul.addr %s23, 16
          %s553 = scalar_lea.hbm %s4, %s552
          %s555 = sshll.u32 %s545, 4
          %s556 = int_to_ptr.vmem [resolvable:$true] %s555
          %558 = dma.vmem_to_hbm [thread:$0]  %s556, 16, %s553, %s543
        $region56: #{nerf_small_forward.1} parent=35 // pred_fallthru
          _
      $region36: #{nerf_small_forward.1} parent=5 // pred_fallthru
        _
      %p559 = scmp.le.s32.totalorder 2, %s18
      // Predicated region
      $region57: #{nerf_small_forward.1} parent=5 // pred_check
        %p560 = pneg %p559
      $region58: #{nerf_small_forward.1} parent=5 // pred_check_branch
        %562 = sbr.rel (%p560) target = $region60
      $region59: #{nerf_small_forward.1} parent=5 // pred_region
        %s563 = ssub.s32 %s18, 2
        // Predicated region
        $region61: #{nerf_small_forward.1} parent=59 // pred_check
          %p564 = pneg %p136
        $region62: #{nerf_small_forward.1} parent=59 // pred_check_branch
          %566 = sbr.rel (%p564) target = $region64
        $region63: #{nerf_small_forward.1} parent=59 // pred_region
          %s567 = sand.u32 %s121, 1
          %s568 = scalar_lea.sflag [#allocation4], %s567
          %s569 = sand.u32 %s121, 1
          %s570 = scalar_lea.vmem [#allocation10], %s569
          %571 = dma.done %s568, 16
        $region64: #{nerf_small_forward.1} parent=59 // pred_fallthru
          _
      $region60: #{nerf_small_forward.1} parent=5 // pred_fallthru
        _
    $region6: #{nerf_small_forward.1} parent=1 // loop_footer
      %s22 = sadd.s32 1, %s18
    $region7: #{nerf_small_forward.1} parent=1 // loop_footer_branch
      %17 = sbr.rel target = $region3
    $region8: #{nerf_small_forward.1} parent=1 // loop_exit
      _
    %572 = vsyncpa [#allocation3], 1
    %s573 = scalar_lea.sflag [#allocation3], 1
    %574 = vsyncpa %s573, 1
    %575 = vsyncpa [#allocation6], 1
    %576 = vsyncpa [#allocation9], 1
    %577 = vsyncpa [#allocation4], 1
    %s578 = scalar_lea.sflag [#allocation4], 1
    %579 = vsyncpa %s578, 1

</llo_original>
